<compile_context>
chip_gen: v7x
topology: tpu7x:2x2x1
jax: 0.10.0
libtpu: 0.0.40
codegen_flags: <defaults>
</compile_context>

<pallas_src>
import jax
import jax.numpy as jnp
from jax.experimental import pallas as pl
from jax.experimental.pallas import tpu as pltpu


def _round_up(x, m):
    return (x + m - 1) // m * m


def hook_kernel(beta_ref, x_ref, wb_ref, wt_ref, bb_ref, bt_ref, o_ref, acc_ref):
    """out = x @ (W_base + beta*W_tgt) + (b_base + beta*b_tgt); f32 accumulate."""
    k = pl.program_id(2)

    @pl.when(k == 0)
    def _():
        acc_ref[...] = jnp.zeros_like(acc_ref)

    beta = beta_ref[0]  # f32 scalar from SMEM
    # Fused weight tile on the VPU — hidden under the MXU-bound dot below.
    w = wb_ref[...] + beta.astype(wb_ref.dtype) * wt_ref[...]
    acc_ref[...] += jnp.dot(x_ref[...], w, preferred_element_type=jnp.float32)

    @pl.when(k == pl.num_programs(2) - 1)
    def _():
        bias = bb_ref[...] + beta * bt_ref[...]          # f32, (1, tn)
        o_ref[...] = (acc_ref[...] + bias).astype(o_ref.dtype)


def module_hook_forward(hidden_states, w_base, b_base, w_tgt, b_tgt, beta,
                        *, compute_dtype=jnp.bfloat16, tm=None, tn=None):
    """ModuleHook forward (parallel, same-type target).

    hidden_states: [B, S, H]; weights stored [H_in, H_out] so y = x @ W + b.
    compute_dtype: matmul operand dtype (default bf16 = full-rate MXU); the
                   accumulator and bias epilogue are always f32.  Callers with
                   static weights should store them in compute_dtype so the
                   casts below are no-ops.
    """
    B, S, H = hidden_states.shape
    M = B * S
    out_dtype = hidden_states.dtype

    # ---- hardware-aware sizing ---------------------------------------------
    try:
        vmem_cap = int(pltpu.get_tpu_info().vmem_capacity_bytes)
    except Exception:
        vmem_cap = 64 * 2**20            # conservative fallback (v7x per-TC)

    mm_dtype = jnp.dtype(compute_dtype) if compute_dtype is not None else jnp.dtype(out_dtype)
    itemsize = mm_dtype.itemsize
    out_itemsize = jnp.dtype(out_dtype).itemsize
    sub = max(8, 32 // itemsize)         # sublane granule: f32 -> 8, bf16 -> 16

    # ---- operands ------------------------------------------------------------
    x2d = hidden_states.reshape(M, H).astype(mm_dtype)
    wb = w_base.astype(mm_dtype)
    wt = w_tgt.astype(mm_dtype)
    bb = b_base.astype(jnp.float32).reshape(1, H)
    bt = b_tgt.astype(jnp.float32).reshape(1, H)
    beta_arr = jnp.asarray(beta, jnp.float32).reshape(1)

    # H padding only when the hidden dim is not lane-aligned (the contraction
    # dim must be zero-padded for correctness).
    H_p = _round_up(H, 128)
    need_pad = H_p != H
    if need_pad:
        # TODO(synk): callers with static weights should pre-pad/cache these.
        pad = H_p - H
        x2d = jnp.pad(x2d, ((0, 0), (0, pad)))
        wb = jnp.pad(wb, ((0, pad), (0, pad)))
        wt = jnp.pad(wt, ((0, pad), (0, pad)))
        bb = jnp.pad(bb, ((0, 0), (0, pad)))
        bt = jnp.pad(bt, ((0, 0), (0, pad)))
    N_p = H_p

    # ---- tiles ---------------------------------------------------------------
    if tm is None:
        # v5e/v6e (128 MiB VMEM): tm=512 keeps the weight stream past the MXU
        # roofline knee; v7x (64 MiB): tm=384 is MXU-bound and fits comfortably.
        tm = 512 if vmem_cap > 96 * 2**20 else 384
    tm_eff = _round_up(min(tm, _round_up(M, sub)), sub)
    grid_m = pl.cdiv(M, tm_eff)          # ragged last row block handled by Pallas

    tn_eff = min(_round_up(tn if tn is not None else 512, 128), N_p)
    if grid_m == 1 and N_p >= 2 * 128:
        # Small-M serving case: give v7x's two TensorCores >=2 parallel N blocks.
        tn_eff = min(tn_eff, max(128, _round_up(N_p // 2, 128)))
    grid_n = pl.cdiv(N_p, tn_eff)        # ragged last column block is fine

    # K tile: whole hidden dim resident when it fits, else the largest
    # 128-multiple divisor of H_p whose double-buffered blocks fit ~45% of VMEM.
    def vmem_est(tk):
        return (2 * (tm_eff * tk + 2 * tk * tn_eff) * itemsize   # x + both weights (dbl-buffered)
                + 2 * tm_eff * tn_eff * out_itemsize             # output (dbl-buffered)
                + tm_eff * tn_eff * 4                            # f32 accumulator scratch
                + 4 * 2 * tn_eff * 4 + 4096)                     # biases, beta, slack

    budget = int(0.45 * vmem_cap)
    q = H_p // 128
    tk_eff = H_p
    for d in range(q, 0, -1):
        if q % d == 0:
            tk_eff = d * 128
            if vmem_est(tk_eff) <= budget:
                break
    grid_k = H_p // tk_eff

    vmem_limit = int(min(0.75 * vmem_cap,                         # <=48 MiB on v7x, <=96 MiB v5e/v6e
                         max(32 * 2**20, 1.4 * vmem_est(tk_eff))))

    grid = (grid_m, grid_n, grid_k)

    out2d = pl.pallas_call(
        hook_kernel,
        out_shape=jax.ShapeDtypeStruct((M, N_p), out_dtype),
        grid=grid,
        in_specs=[
            pl.BlockSpec(memory_space=pltpu.MemorySpace.SMEM),        # beta (scalar)
            pl.BlockSpec((tm_eff, tk_eff), lambda i, j, k: (i, k)),   # x rows
            pl.BlockSpec((tk_eff, tn_eff), lambda i, j, k: (k, j)),   # W_base tile
            pl.BlockSpec((tk_eff, tn_eff), lambda i, j, k: (k, j)),   # W_target tile
            pl.BlockSpec((1, tn_eff), lambda i, j, k: (0, j)),        # b_base cols
            pl.BlockSpec((1, tn_eff), lambda i, j, k: (0, j)),        # b_target cols
        ],
        out_specs=pl.BlockSpec((tm_eff, tn_eff), lambda i, j, k: (i, j)),
        scratch_shapes=[pltpu.VMEM((tm_eff, tn_eff), jnp.float32)],
        compiler_params=pltpu.CompilerParams(
            dimension_semantics=("parallel", "parallel", "arbitrary"),
            vmem_limit_bytes=vmem_limit),
        cost_estimate=pl.CostEstimate(
            flops=2 * M * H_p * N_p + 4 * H_p * N_p,
            bytes_accessed=(M * H_p + 2 * H_p * N_p) * itemsize
                           + 2 * N_p * 4 + M * N_p * out_itemsize,
            transcendentals=0),
    )(beta_arr, x2d, wb, wt, bb, bt)

    if need_pad:
        out2d = out2d[:, :H]
    return out2d.reshape(B, S, H)


if __name__ == "__main__":
    # Small but lane-dense shapes: hidden=128 so no padding path is needed.
    B, S, H = 2, 8, 128  # M = B*S = 16 rows

    key = jax.random.PRNGKey(0)
    kx, kw, kb, kw2, kb2 = jax.random.split(key, 5)

    hidden_states = jax.random.normal(kx, (B, S, H), dtype=jnp.float32)

    # base_layer = Linear(H, H); PyTorch-style uniform init.
    bound = 1.0 / (H ** 0.5)
    w_base = jax.random.uniform(kw, (H, H), jnp.float32, -bound, bound)
    b_base = jax.random.uniform(kb, (H,), jnp.float32, -bound, bound)

    # target starts as deepcopy(base_layer) but is trainable and diverges;
    # use distinct values to exercise the in-kernel fusion path.
    w_tgt = jax.random.uniform(kw2, (H, H), jnp.float32, -bound, bound)
    b_tgt = jax.random.uniform(kb2, (H,), jnp.float32, -bound, bound)

    beta = 1.0  # torch.nn.Parameter(torch.tensor(1.0))

    # Pure-JAX reference in the original (unfused) op order.
    x2d = hidden_states.reshape(-1, H)
    ref = (x2d @ w_base + b_base) + beta * (x2d @ w_tgt + b_tgt)

    # 1) f32 compute path — tight numerical parity with the PyTorch module.
    out_f32 = module_hook_forward(hidden_states, w_base, b_base, w_tgt, b_tgt,
                                  beta, compute_dtype=jnp.float32)
    out_f32 = jax.block_until_ready(out_f32)
    assert jnp.allclose(out_f32.reshape(-1, H), ref, atol=2e-4, rtol=2e-4)

    # 2) default path (bf16 operands, f32 accumulation) — bf16-level tolerance.
    out_bf16 = module_hook_forward(hidden_states, w_base, b_base, w_tgt, b_tgt, beta)
    out_bf16 = jax.block_until_ready(out_bf16)
    assert jnp.allclose(out_bf16.reshape(-1, H), ref, atol=5e-2, rtol=5e-2)

    # TODO(synk): the non-parallel branch and the different-type-target branch
    # (which route through self.norm LayerNorm) are config-dependent and not
    # exercised by the default (deepcopy target, is_parallel=True) config.
    print("KERNEL_OK")
</pallas_src>

<mosaic_0001>
module attributes {stable_mosaic.version = 11 : i64} {
  func.func @hook_kernel(%arg0: i32, %arg1: i32, %arg2: i32, %arg3: memref<1xf32, #tpu.memory_space<smem>>, %arg4: memref<16x128xf32, #tpu.memory_space<vmem>>, %arg5: memref<128x128xf32, #tpu.memory_space<vmem>>, %arg6: memref<128x128xf32, #tpu.memory_space<vmem>>, %arg7: memref<1x128xf32, #tpu.memory_space<vmem>>, %arg8: memref<1x128xf32, #tpu.memory_space<vmem>>, %arg9: memref<16x128xf32, #tpu.memory_space<vmem>>, %arg10: memref<16x128xf32, #tpu.memory_space<vmem>>) attributes {dimension_semantics = [#tpu.dimension_semantics<parallel>, #tpu.dimension_semantics<parallel>, #tpu.dimension_semantics<arbitrary>], iteration_bounds = array<i64: 1, 1, 1>, scalar_prefetch = 0 : i64, scratch_operands = 1 : i64, tpu.core_type = #tpu.core_type<tc>, window_params = [{transform_indices = @transform_0, window_bounds = array<i64: 1>}, {transform_indices = @transform_1, window_bounds = array<i64: 16, 128>}, {transform_indices = @transform_2, window_bounds = array<i64: 128, 128>}, {transform_indices = @transform_3, window_bounds = array<i64: 128, 128>}, {transform_indices = @transform_4, window_bounds = array<i64: 1, 128>}, {transform_indices = @transform_5, window_bounds = array<i64: 1, 128>}, {transform_indices = @transform_6, window_bounds = array<i64: 16, 128>}]} {
    %c0_i32 = arith.constant 0 : i32
    %0 = arith.cmpi eq, %arg2, %c0_i32 : i32
    %1 = arith.extui %0 : i1 to i32
    %c0_i32_0 = arith.constant 0 : i32
    %2 = arith.cmpi ne, %1, %c0_i32_0 : i32
    scf.if %2 {
      %cst_13 = arith.constant 0.000000e+00 : f32
      %17 = vector.broadcast %cst_13 : f32 to vector<16x128xf32>
      %c0_14 = arith.constant 0 : index
      %c0_15 = arith.constant 0 : index
      %18 = vector.load %arg10[%c0_14, %c0_15] : memref<16x128xf32, #tpu.memory_space<vmem>>, vector<16x128xf32>
      tpu.vector_store %arg10[%c0_14, %c0_15], %17 {strides = array<i32>} : memref<16x128xf32, #tpu.memory_space<vmem>>, vector<16x128xf32>,
    } else {
    }
    %c0 = arith.constant 0 : index
    %3 = memref.load %arg3[%c0] : memref<1xf32, #tpu.memory_space<smem>>
    %c0_1 = arith.constant 0 : index
    %c0_2 = arith.constant 0 : index
    %4 = vector.load %arg5[%c0_1, %c0_2] : memref<128x128xf32, #tpu.memory_space<vmem>>, vector<128x128xf32>
    %c0_3 = arith.constant 0 : index
    %c0_4 = arith.constant 0 : index
    %5 = vector.load %arg6[%c0_3, %c0_4] : memref<128x128xf32, #tpu.memory_space<vmem>>, vector<128x128xf32>
    %6 = vector.broadcast %3 : f32 to vector<128x128xf32>
    %7 = arith.mulf %6, %5 : vector<128x128xf32>
    %8 = arith.addf %4, %7 : vector<128x128xf32>
    %c0_5 = arith.constant 0 : index
    %c0_6 = arith.constant 0 : index
    %9 = vector.load %arg10[%c0_5, %c0_6] : memref<16x128xf32, #tpu.memory_space<vmem>>, vector<16x128xf32>
    %c0_7 = arith.constant 0 : index
    %c0_8 = arith.constant 0 : index
    %10 = vector.load %arg4[%c0_7, %c0_8] : memref<16x128xf32, #tpu.memory_space<vmem>>, vector<16x128xf32>
    %cst = arith.constant dense<0.000000e+00> : vector<16x128xf32>
    %11 = tpu.matmul %10, %8, %cst {dimension_numbers = #tpu.dot_dimension_numbers<[1], [0], [0], [1], [0, 0, 1, 1], [], []>} : vector<16x128xf32>, vector<128x128xf32>, vector<16x128xf32> -> vector<16x128xf32>
    %12 = arith.addf %9, %11 : vector<16x128xf32>
    %c0_9 = arith.constant 0 : index
    %c0_10 = arith.constant 0 : index
    %13 = vector.load %arg10[%c0_9, %c0_10] : memref<16x128xf32, #tpu.memory_space<vmem>>, vector<16x128xf32>
    tpu.vector_store %arg10[%c0_9, %c0_10], %12 {strides = array<i32>} : memref<16x128xf32, #tpu.memory_space<vmem>>, vector<16x128xf32>,
    %c0_i32_11 = arith.constant 0 : i32
    %14 = arith.cmpi eq, %arg2, %c0_i32_11 : i32
    %15 = arith.extui %14 : i1 to i32
    %c0_i32_12 = arith.constant 0 : i32
    %16 = arith.cmpi ne, %15, %c0_i32_12 : i32
    scf.if %16 {
      %c0_13 = arith.constant 0 : index
      %c0_14 = arith.constant 0 : index
      %17 = vector.load %arg7[%c0_13, %c0_14] : memref<1x128xf32, #tpu.memory_space<vmem>>, vector<1x128xf32>
      %c0_15 = arith.constant 0 : index
      %c0_16 = arith.constant 0 : index
      %18 = vector.load %arg8[%c0_15, %c0_16] : memref<1x128xf32, #tpu.memory_space<vmem>>, vector<1x128xf32>
      %19 = vector.broadcast %3 : f32 to vector<1x128xf32>
      %20 = arith.mulf %19, %18 : vector<1x128xf32>
      %21 = arith.addf %17, %20 : vector<1x128xf32>
      %c0_17 = arith.constant 0 : index
      %c0_18 = arith.constant 0 : index
      %22 = vector.load %arg10[%c0_17, %c0_18] : memref<16x128xf32, #tpu.memory_space<vmem>>, vector<16x128xf32>
      %23 = vector.broadcast %21 : vector<1x128xf32> to vector<16x128xf32>
      %24 = arith.addf %22, %23 : vector<16x128xf32>
      %c0_19 = arith.constant 0 : index
      %c0_20 = arith.constant 0 : index
      %25 = vector.load %arg9[%c0_19, %c0_20] : memref<16x128xf32, #tpu.memory_space<vmem>>, vector<16x128xf32>
      tpu.vector_store %arg9[%c0_19, %c0_20], %24 {strides = array<i32>} : memref<16x128xf32, #tpu.memory_space<vmem>>, vector<16x128xf32>,
    } else {
    }
    return
  }
  func.func @transform_0(%arg0: i32, %arg1: i32, %arg2: i32) -> i32 {
    %c0_i32 = arith.constant 0 : i32
    %c0_i32_0 = arith.constant 0 : i32
    return %c0_i32 : i32
  }
  func.func @transform_1(%arg0: i32, %arg1: i32, %arg2: i32) -> (i32, i32) {
    %c0_i32 = arith.constant 0 : i32
    return %arg0, %arg2 : i32, i32
  }
  func.func @transform_2(%arg0: i32, %arg1: i32, %arg2: i32) -> (i32, i32) {
    %c0_i32 = arith.constant 0 : i32
    return %arg2, %arg1 : i32, i32
  }
  func.func @transform_3(%arg0: i32, %arg1: i32, %arg2: i32) -> (i32, i32) {
    %c0_i32 = arith.constant 0 : i32
    return %arg2, %arg1 : i32, i32
  }
  func.func @transform_4(%arg0: i32, %arg1: i32, %arg2: i32) -> (i32, i32) {
    %c0_i32 = arith.constant 0 : i32
    %c0_i32_0 = arith.constant 0 : i32
    return %c0_i32, %arg1 : i32, i32
  }
  func.func @transform_5(%arg0: i32, %arg1: i32, %arg2: i32) -> (i32, i32) {
    %c0_i32 = arith.constant 0 : i32
    %c0_i32_0 = arith.constant 0 : i32
    return %c0_i32, %arg1 : i32, i32
  }
  func.func @transform_6(%arg0: i32, %arg1: i32, %arg2: i32) -> (i32, i32) {
    %c0_i32 = arith.constant 0 : i32
    return %arg0, %arg1 : i32, i32
  }
}

</mosaic_0001>

<llo_original>
// kernel: tpu_custom_call.1
$region0: #{tpu_custom_call.1}
  #allocation0 [shape = 'u32[]', space=smem, size = 0x4, offset = 0x4, fixed_abs, tag = 'smem constant byte address 0x4 - core index']
  #allocation1 [shape = 'u32[144,128]{1,0:T(1,128)}', space=vmem, size = 0x12000, scoped, tag = 'internal scratch']
  #allocation2 [shape = 'f32[16,128]{1,0:T(8,128)}', space=vmem, size = 0x2000, scoped, tag = 'scratch operand']
  #allocation3 [shape = 'f32[1]{0:T(128)S(6)}', space=smem, size = 0x200, scoped, tag = 'scoped memory for tpu_custom_call.1']
  %s0 = inlined_call_operand.<no memory space> [shape: f32[1], index: 0, kind: input, shape index: {}]
  %s1 = inlined_call_operand.hbm [shape: f32[16,128], index: 1, kind: input, shape index: {}]
  %s2 = inlined_call_operand.hbm [shape: f32[128,128], index: 2, kind: input, shape index: {}]
  %s3 = inlined_call_operand.hbm [shape: f32[128,128], index: 3, kind: input, shape index: {}]
  %s4 = inlined_call_operand.vmem [shape: f32[1,128], index: 4, kind: input, shape index: {}]
  %s5 = inlined_call_operand.vmem [shape: f32[1,128], index: 5, kind: input, shape index: {}]
  %s6 = inlined_call_operand.hbm [shape: f32[16,128], index: 6, kind: output, shape index: {}]
  %s7 = sld [smem:[#allocation0]]
  $region54: #{tpu_custom_call.1} parent=0
    _
  %s9 = ssub.s32 1, %s7
  %s10 = scalar_select 0, %s9, %s7
  %11 = sst [smem:[#allocation3]] %s0
  $region1: #{tpu_custom_call.1} parent=0
    #allocation4 [shape = 'u8[8192]{0}', space=vmem, size = 0x2000, scoped, tag = 'input window, operand 1, single buffered']
    #allocation5 [shape = 's32[1]{0}', space=sflag, size = 0x4, scoped, tag = 'scoped memory for tpu_custom_call.1']
    #allocation6 [shape = 's32[1]{0}', space=sflag, size = 0x4, scoped, tag = 'scoped memory for tpu_custom_call.1']
    #allocation7 [shape = 'u8[65536]{0}', space=vmem, size = 0x10000, scoped, tag = 'input window, operand 2, single buffered']
    #allocation8 [shape = 's32[1]{0}', space=sflag, size = 0x4, scoped, tag = 'scoped memory for tpu_custom_call.1']
    #allocation9 [shape = 'u8[65536]{0}', space=vmem, size = 0x10000, scoped, tag = 'input window, operand 3, single buffered']
    #allocation10 [shape = 'u8[8192]{0}', space=vmem, size = 0x2000, scoped, tag = 'output window, operand 0, single buffered']
    %12 = vsyncpa [#allocation5], 0
    %13 = vsyncpa [#allocation8], 0
    %14 = vsyncpa [#allocation6], 0
    // Predicated region
    $region2: #{tpu_custom_call.1} parent=1 // pred_check
      _
    $region3: #{tpu_custom_call.1} parent=1 // pred_check_branch
      %16 = sbr.rel (0) target = $region5
    $region4: #{tpu_custom_call.1} parent=1 // pred_region
      _
    $region5: #{tpu_custom_call.1} parent=1 // pred_fallthru
      _
    // Predicated region
    $region6: #{tpu_custom_call.1} parent=1 // pred_check
      _
    $region7: #{tpu_custom_call.1} parent=1 // pred_check_branch
      %18 = sbr.rel (0) target = $region9
    $region8: #{tpu_custom_call.1} parent=1 // pred_region
      %s20 = ssub.s32 256, 256
      %21 = vsyncadd [#allocation5], %s20
      %s22 = sshll.u32 [#allocation4], 4
      %s23 = int_to_ptr.vmem [resolvable:$true] %s22
      %28 = dma.hbm_to_vmem [thread:$0]  %s1, 256, %s23, [#allocation5], 128, 128, 8
    $region9: #{tpu_custom_call.1} parent=1 // pred_fallthru
      _
    // Predicated region
    $region10: #{tpu_custom_call.1} parent=1 // pred_check
      _
    $region11: #{tpu_custom_call.1} parent=1 // pred_check_branch
      %30 = sbr.rel (0) target = $region13
    $region12: #{tpu_custom_call.1} parent=1 // pred_region
      %s32 = ssub.s32 2048, 2048
      %33 = vsyncadd [#allocation8], %s32
      %s34 = sshll.u32 [#allocation7], 4
      %s35 = int_to_ptr.vmem [resolvable:$true] %s34
      %40 = dma.hbm_to_vmem [thread:$0]  %s2, 2048, %s35, [#allocation8], 128, 128, 8
    $region13: #{tpu_custom_call.1} parent=1 // pred_fallthru
      _
    // Predicated region
    $region14: #{tpu_custom_call.1} parent=1 // pred_check
      _
    $region15: #{tpu_custom_call.1} parent=1 // pred_check_branch
      %42 = sbr.rel (0) target = $region17
    $region16: #{tpu_custom_call.1} parent=1 // pred_region
      %s44 = ssub.s32 2048, 2048
      %45 = vsyncadd [#allocation8], %s44
      %s46 = sshll.u32 [#allocation9], 4
      %s47 = int_to_ptr.vmem [resolvable:$true] %s46
      %52 = dma.hbm_to_vmem [thread:$0]  %s3, 2048, %s47, [#allocation8], 128, 128, 8
    $region17: #{tpu_custom_call.1} parent=1 // pred_fallthru
      _
    // Predicated region
    $region18: #{tpu_custom_call.1} parent=1 // pred_check
      _
    $region19: #{tpu_custom_call.1} parent=1 // pred_check_branch
      %54 = sbr.rel (0) target = $region21
    $region20: #{tpu_custom_call.1} parent=1 // pred_region
      _
    $region21: #{tpu_custom_call.1} parent=1 // pred_fallthru
      _
    // Predicated region
    $region22: #{tpu_custom_call.1} parent=1 // pred_check
      _
    $region23: #{tpu_custom_call.1} parent=1 // pred_check_branch
      %56 = sbr.rel (0) target = $region25
    $region24: #{tpu_custom_call.1} parent=1 // pred_region
      _
    $region25: #{tpu_custom_call.1} parent=1 // pred_fallthru
      _
    // Predicated region
    $region26: #{tpu_custom_call.1} parent=1 // pred_check
      _
    $region27: #{tpu_custom_call.1} parent=1 // pred_check_branch
      %58 = sbr.rel (0) target = $region29
    $region28: #{tpu_custom_call.1} parent=1 // pred_region
      %59 = dma.done [#allocation5], 256
    $region29: #{tpu_custom_call.1} parent=1 // pred_fallthru
      _
    // Predicated region
    $region30: #{tpu_custom_call.1} parent=1 // pred_check
      _
    $region31: #{tpu_custom_call.1} parent=1 // pred_check_branch
      %61 = sbr.rel (0) target = $region33
    $region32: #{tpu_custom_call.1} parent=1 // pred_region
      %62 = dma.done [#allocation8], 2048
    $region33: #{tpu_custom_call.1} parent=1 // pred_fallthru
      _
    // Predicated region
    $region34: #{tpu_custom_call.1} parent=1 // pred_check
      _
    $region35: #{tpu_custom_call.1} parent=1 // pred_check_branch
      %64 = sbr.rel (0) target = $region37
    $region36: #{tpu_custom_call.1} parent=1 // pred_region
      %65 = dma.done [#allocation8], 2048
    $region37: #{tpu_custom_call.1} parent=1 // pred_fallthru
      _
    %p66 = scmp.eq.s32.totalorder 0, 0
    // Predicated region
    $region38: #{tpu_custom_call.1} parent=1 // pred_check
      %p67 = pneg %p66
    $region39: #{tpu_custom_call.1} parent=1 // pred_check_branch
      %69 = sbr.rel (%p67) target = $region41
    $region40: #{tpu_custom_call.1} parent=1 // pred_region
      %70 = vst [vmem:[#allocation2] sm:$0xff] 0.0
      %71 = vst [vmem:[#allocation2 + $0x8] sm:$0xff] 0.0
    $region41: #{tpu_custom_call.1} parent=1 // pred_fallthru
      _
    %s72 = sld [smem:[#allocation3]]
    %v73 = vld [vmem:[#allocation7] sm:$0xff]
    %v74 = vld [vmem:[#allocation7 + $0x8] sm:$0xff]
    %v75 = vld [vmem:[#allocation7 + $0x10] sm:$0xff]
    %v76 = vld [vmem:[#allocation7 + $0x18] sm:$0xff]
    %v77 = vld [vmem:[#allocation7 + $0x20] sm:$0xff]
    %v78 = vld [vmem:[#allocation7 + $0x28] sm:$0xff]
    %v79 = vld [vmem:[#allocation7 + $0x30] sm:$0xff]
    %v80 = vld [vmem:[#allocation7 + $0x38] sm:$0xff]
    %v81 = vld [vmem:[#allocation7 + $0x40] sm:$0xff]
    %v82 = vld [vmem:[#allocation7 + $0x48] sm:$0xff]
    %v83 = vld [vmem:[#allocation7 + $0x50] sm:$0xff]
    %v84 = vld [vmem:[#allocation7 + $0x58] sm:$0xff]
    %v85 = vld [vmem:[#allocation7 + $0x60] sm:$0xff]
    %v86 = vld [vmem:[#allocation7 + $0x68] sm:$0xff]
    %v87 = vld [vmem:[#allocation7 + $0x70] sm:$0xff]
    %v88 = vld [vmem:[#allocation7 + $0x78] sm:$0xff]
    %v89 = vld [vmem:[#allocation9] sm:$0xff]
    %v90 = vld [vmem:[#allocation9 + $0x8] sm:$0xff]
    %v91 = vld [vmem:[#allocation9 + $0x10] sm:$0xff]
    %v92 = vld [vmem:[#allocation9 + $0x18] sm:$0xff]
    %v93 = vld [vmem:[#allocation9 + $0x20] sm:$0xff]
    %v94 = vld [vmem:[#allocation9 + $0x28] sm:$0xff]
    %v95 = vld [vmem:[#allocation9 + $0x30] sm:$0xff]
    %v96 = vld [vmem:[#allocation9 + $0x38] sm:$0xff]
    %v97 = vld [vmem:[#allocation9 + $0x40] sm:$0xff]
    %v98 = vld [vmem:[#allocation9 + $0x48] sm:$0xff]
    %v99 = vld [vmem:[#allocation9 + $0x50] sm:$0xff]
    %v100 = vld [vmem:[#allocation9 + $0x58] sm:$0xff]
    %v101 = vld [vmem:[#allocation9 + $0x60] sm:$0xff]
    %v102 = vld [vmem:[#allocation9 + $0x68] sm:$0xff]
    %v103 = vld [vmem:[#allocation9 + $0x70] sm:$0xff]
    %v104 = vld [vmem:[#allocation9 + $0x78] sm:$0xff]
    %v105 = vstv %s72
    %v106 = vmul.f32 %v105, %v89
    %v107 = vmul.f32 %v105, %v90
    %v108 = vmul.f32 %v105, %v91
    %v109 = vmul.f32 %v105, %v92
    %v110 = vmul.f32 %v105, %v93
    %v111 = vmul.f32 %v105, %v94
    %v112 = vmul.f32 %v105, %v95
    %v113 = vmul.f32 %v105, %v96
    %v114 = vmul.f32 %v105, %v97
    %v115 = vmul.f32 %v105, %v98
    %v116 = vmul.f32 %v105, %v99
    %v117 = vmul.f32 %v105, %v100
    %v118 = vmul.f32 %v105, %v101
    %v119 = vmul.f32 %v105, %v102
    %v120 = vmul.f32 %v105, %v103
    %v121 = vmul.f32 %v105, %v104
    %v122 = vadd.f32 %v73, %v106
    %v123 = vadd.f32 %v74, %v107
    %v124 = vadd.f32 %v75, %v108
    %v125 = vadd.f32 %v76, %v109
    %v126 = vadd.f32 %v77, %v110
    %v127 = vadd.f32 %v78, %v111
    %v128 = vadd.f32 %v79, %v112
    %v129 = vadd.f32 %v80, %v113
    %v130 = vadd.f32 %v81, %v114
    %v131 = vadd.f32 %v82, %v115
    %v132 = vadd.f32 %v83, %v116
    %v133 = vadd.f32 %v84, %v117
    %v134 = vadd.f32 %v85, %v118
    %v135 = vadd.f32 %v86, %v119
    %v136 = vadd.f32 %v87, %v120
    %v137 = vadd.f32 %v88, %v121
    %v138 = vld [vmem:[#allocation2] sm:$0xff]
    %v139 = vld [vmem:[#allocation2 + $0x8] sm:$0xff]
    %v140 = vld [vmem:[#allocation4] sm:$0xff]
    %v141 = vld [vmem:[#allocation4 + $0x8] sm:$0xff]
    %142 = vmatprep.subr.mxu0 0.0
    %143 = vmatpush1.msra.mxu0 %v122
    %144 = vmatprep.subr.mxu0 0.0
    %145 = vmatpush1.msra.mxu0 %v123
    %146 = vmatprep.subr.mxu0 0.0
    %147 = vmatpush1.msra.mxu0 %v124
    %148 = vmatprep.subr.mxu0 0.0
    %149 = vmatpush1.msra.mxu0 %v125
    %150 = vmatprep.subr.mxu0 0.0
    %151 = vmatpush1.msra.mxu0 %v126
    %152 = vmatprep.subr.mxu0 0.0
    %153 = vmatpush1.msra.mxu0 %v127
    %154 = vmatprep.subr.mxu0 0.0
    %155 = vmatpush1.msra.mxu0 %v128
    %156 = vmatprep.subr.mxu0 0.0
    %157 = vmatpush1.msra.mxu0 %v129
    %158 = vmatprep.subr.mxu0 0.0
    %159 = vmatpush1.msra.mxu0 %v130
    %160 = vmatprep.subr.mxu0 0.0
    %161 = vmatpush1.msra.mxu0 %v131
    %162 = vmatprep.subr.mxu0 0.0
    %163 = vmatpush1.msra.mxu0 %v132
    %164 = vmatprep.subr.mxu0 0.0
    %165 = vmatpush1.msra.mxu0 %v133
    %166 = vmatprep.subr.mxu0 0.0
    %167 = vmatpush1.msra.mxu0 %v134
    %168 = vmatprep.subr.mxu0 0.0
    %169 = vmatpush1.msra.mxu0 %v135
    %170 = vmatprep.subr.mxu0 0.0
    %171 = vmatpush1.msra.mxu0 %v136
    %172 = vmatprep.subr.mxu0 0.0
    %173 = vmatpush1.msra.mxu0 %v137
    %174 = vmatprep.subr.mxu0 0.0
    %175 = vmatpush1.msra.mxu0 0.0
    %176 = vmatprep.subr.mxu0 0.0
    %177 = vmatpush1.msra.mxu0 0.0
    %178 = vmatprep.subr.mxu0 0.0
    %179 = vmatpush1.msra.mxu0 0.0
    %180 = vmatprep.subr.mxu0 0.0
    %181 = vmatpush1.msra.mxu0 0.0
    %182 = vmatprep.subr.mxu0 0.0
    %183 = vmatpush1.msra.mxu0 0.0
    %184 = vmatprep.subr.mxu0 0.0
    %185 = vmatpush1.msra.mxu0 0.0
    %186 = vmatprep.subr.mxu0 0.0
    %187 = vmatpush1.msra.mxu0 0.0
    %188 = vmatprep.subr.mxu0 0.0
    %189 = vmatpush1.msra.mxu0 0.0
    %190 = vmatprep.subr.mxu0 0.0
    %191 = vmatpush1.msra.mxu0 0.0
    %192 = vmatprep.subr.mxu0 0.0
    %193 = vmatpush1.msra.mxu0 0.0
    %194 = vmatprep.subr.mxu0 0.0
    %195 = vmatpush1.msra.mxu0 0.0
    %196 = vmatprep.subr.mxu0 0.0
    %197 = vmatpush1.msra.mxu0 0.0
    %198 = vmatprep.subr.mxu0 0.0
    %199 = vmatpush1.msra.mxu0 0.0
    %200 = vmatprep.subr.mxu0 0.0
    %201 = vmatpush1.msra.mxu0 0.0
    %202 = vmatprep.subr.mxu0 0.0
    %203 = vmatpush1.msra.mxu0 0.0
    %204 = vmatprep.subr.mxu0 0.0
    %205 = vmatpush1.msra.mxu0 0.0
    %206 = vmatprep.mubr.f32.mxu0 0.0
    %207 = vmatmul.mubr.f32.gmra.mrb[0].mxu0 %v140
    %v208 = vpop.f32.mrb[0].mxu0
    %v209 = vadd.f32 0.0, %v208
    %v210 = vpop.f32.mrb[0].mxu0
    %211 = vmatprep.mubr.f32.mxu0 0.0
    %212 = vmatmul.mubr.f32.gmra.mrb[0].mxu0 %v141
    %v213 = vpop.f32.mrb[0].mxu0
    %v214 = vadd.f32 0.0, %v213
    %v215 = vpop.f32.mrb[0].mxu0
    %216 = vdwg.mxu0
    %v217 = vadd.f32 %v138, %v209
    %v218 = vadd.f32 %v139, %v214
    %219 = vst [vmem:[#allocation2] sm:$0xff] %v217
    %220 = vst [vmem:[#allocation2 + $0x8] sm:$0xff] %v218
    // Predicated region
    $region42: #{tpu_custom_call.1} parent=1 // pred_check
      %p221 = pneg %p66
    $region43: #{tpu_custom_call.1} parent=1 // pred_check_branch
      %223 = sbr.rel (%p221) target = $region45
    $region44: #{tpu_custom_call.1} parent=1 // pred_region
      %v224 = vld [vmem:[%s4] sm:$0x1]
      %v225 = vld [vmem:[%s5] sm:$0x1]
      %v226 = vmul.f32 %v105, %v225
      %v227 = vadd.f32 %v224, %v226
      %v228 = vld [vmem:[#allocation2] sm:$0xff]
      %v229 = vld [vmem:[#allocation2 + $0x8] sm:$0xff]
      %v231 = vlaneseq
      %v232 = vshrl.u32 %v231, 7
      %v233 = vsub.s32 0, %v232
      %v234 = vrot.slane %v227, %v233
      %v236 = vadd.f32 %v228, %v234
      %v237 = vadd.f32 %v229, %v234
      %238 = vst [vmem:[#allocation10] sm:$0xff] %v236
      %239 = vst [vmem:[#allocation10 + $0x8] sm:$0xff] %v237
    $region45: #{tpu_custom_call.1} parent=1 // pred_fallthru
      _
    // Predicated region
    $region46: #{tpu_custom_call.1} parent=1 // pred_check
      _
    $region47: #{tpu_custom_call.1} parent=1 // pred_check_branch
      %241 = sbr.rel (0) target = $region49
    $region48: #{tpu_custom_call.1} parent=1 // pred_region
      %s243 = ssub.s32 256, 256
      %244 = vsyncadd [#allocation6], %s243
      %s245 = sshll.u32 [#allocation10], 4
      %s246 = int_to_ptr.vmem [resolvable:$true] %s245
      %251 = dma.vmem_to_hbm [thread:$0]  %s246, 256, %s6, [#allocation6], 128, 128, 8
    $region49: #{tpu_custom_call.1} parent=1 // pred_fallthru
      _
    // Predicated region
    $region50: #{tpu_custom_call.1} parent=1 // pred_check
      _
    $region51: #{tpu_custom_call.1} parent=1 // pred_check_branch
      %253 = sbr.rel (0) target = $region53
    $region52: #{tpu_custom_call.1} parent=1 // pred_region
      %254 = dma.done [#allocation6], 256
    $region53: #{tpu_custom_call.1} parent=1 // pred_fallthru
      _
    %255 = vsyncpa [#allocation5], 1
    %256 = vsyncpa [#allocation8], 1
    %257 = vsyncpa [#allocation6], 1

</llo_original>
